<compile_context>
chip_gen: v7x
topology: tpu7x:2x2x1
jax: 0.10.0
libtpu: 0.0.40
codegen_flags: <defaults>
</compile_context>

<pallas_src>
import jax
import jax.numpy as jnp
from jax.experimental import pallas as pl
from jax.experimental.pallas import tpu as pltpu


def discriminator_z_kernel(x_ref, w1_ref, b1_ref, w2_ref, b2_ref, w3_ref, b3_ref, o_ref):
    x = x_ref[...]                                                     # (TM, z) bf16
    # Layer 1: small-K matmul on the MXU, f32 accumulate; bias/ReLU in f32.
    h1 = jnp.dot(x, w1_ref[...], preferred_element_type=jnp.float32) + b1_ref[...]
    h1 = jnp.maximum(h1, 0.0)
    # Layer 2: dominant 512x512 matmul, bf16 operands, f32 accumulate.
    h2 = jnp.dot(h1.astype(jnp.bfloat16), w2_ref[...],
                 preferred_element_type=jnp.float32) + b2_ref[...]
    h2 = jnp.maximum(h2, 0.0)
    # Layer 3 (N=1): VPU multiply + lane reduction; the MXU would waste 255/256 columns.
    logit = jnp.sum(h2 * w3_ref[...], axis=-1, keepdims=True) + b3_ref[0]
    # Sigmoid: exp and approx reciprocal both ride the otherwise-idle EUP slot.
    o_ref[...] = pl.reciprocal(1.0 + jnp.exp(-logit), approx=True).astype(o_ref.dtype)


def discriminator_z(x, params, *, tile_m=256):
    """Forward pass of DiscriminatorZ; x is (batch, ...) and is flattened to (batch, z)."""
    w1, b1, w2, b2, w3, b3 = params
    batch = x.shape[0]
    x2d = x.reshape(batch, -1)                     # mirrors x.view(batch_size, -1)
    z = x2d.shape[1]
    hidden = w1.shape[1]

    # Batch tile: 256 (one MXU pass on v6e/v7x, multiple of v5e's 128 rows) for large
    # batches; small batches are rounded up to a sublane multiple (8) to avoid padding waste.
    if batch >= tile_m:
        tm = tile_m
    else:
        tm = max(8, ((batch + 7) // 8) * 8)
    batch_pad = ((batch + tm - 1) // tm) * tm
    if batch_pad != batch:
        x2d = jnp.pad(x2d, ((0, batch_pad - batch), (0, 0)))
    grid = (batch_pad // tm,)

    # bf16 for MXU inputs / weight DMA; biases, w3 row and accumulation stay f32.
    x_bf16 = x2d.astype(jnp.bfloat16)
    w1_bf16 = w1.astype(jnp.bfloat16)
    w2_bf16 = w2.astype(jnp.bfloat16)
    b1_f32 = b1.reshape(1, hidden).astype(jnp.float32)
    b2_f32 = b2.reshape(1, hidden).astype(jnp.float32)
    w3_row = w3.reshape(1, hidden).astype(jnp.float32)   # (512, 1) column -> (1, 512) row
    b3_s = b3.reshape(1).astype(jnp.float32)             # scalar -> SMEM

    def resident(shape):                                  # weights: same block every step
        return pl.BlockSpec(shape, lambda i: (0,) * len(shape))

    out = pl.pallas_call(
        discriminator_z_kernel,
        out_shape=jax.ShapeDtypeStruct((batch_pad, 1), jnp.float32),
        grid=grid,
        in_specs=[
            pl.BlockSpec((tm, z), lambda i: (i, 0)),            # x: tiled over batch
            resident((z, hidden)),                              # w1 (VMEM-resident)
            resident((1, hidden)),                              # b1
            resident((hidden, hidden)),                         # w2 (VMEM-resident)
            resident((1, hidden)),                              # b2
            resident((1, hidden)),                              # w3 as lane-dense row
            pl.BlockSpec(memory_space=pltpu.MemorySpace.SMEM),  # b3 scalar
        ],
        out_specs=pl.BlockSpec((tm, 1), lambda i: (i, 0)),
        compiler_params=pltpu.CompilerParams(
            dimension_semantics=("parallel",),      # shard batch tiles across v7x's 2 TCs
            vmem_limit_bytes=32 * 1024 * 1024,      # explicit cap; fits v7x's 64 MiB VMEM
        ),
    )(x_bf16, w1_bf16, b1_f32, w2_bf16, b2_f32, w3_row, b3_s)

    return out[:batch]


def init_params(key, z_dim, hidden=512):
    # Deterministic synthetic initialization; shapes match the nn.Linear layers,
    # weights stored as (in_features, out_features) so the kernel computes x @ W + b.
    k1, k2, k3, k4, k5, k6 = jax.random.split(key, 6)
    w1 = jax.random.normal(k1, (z_dim, hidden), jnp.float32) * 0.05
    b1 = jax.random.normal(k2, (hidden,), jnp.float32) * 0.05
    w2 = jax.random.normal(k3, (hidden, hidden), jnp.float32) * 0.05
    b2 = jax.random.normal(k4, (hidden,), jnp.float32) * 0.05
    w3 = jax.random.normal(k5, (hidden, 1), jnp.float32) * 0.05
    b3 = jax.random.normal(k6, (1,), jnp.float32) * 0.05
    return w1, b1, w2, b2, w3, b3


def reference_f32(x, params):
    w1, b1, w2, b2, w3, b3 = params
    xr = x.reshape(x.shape[0], -1)
    h1 = jnp.maximum(xr @ w1 + b1, 0.0)
    h2 = jnp.maximum(h1 @ w2 + b2, 0.0)
    return jax.nn.sigmoid(h2 @ w3 + b3)


def reference_bf16(x, params):
    # Same bf16 casts as the kernel, for a tight numerical check.
    w1, b1, w2, b2, w3, b3 = params
    xb = x.reshape(x.shape[0], -1).astype(jnp.bfloat16)
    h1 = jnp.dot(xb, w1.astype(jnp.bfloat16), preferred_element_type=jnp.float32) + b1
    h1 = jnp.maximum(h1, 0.0)
    h2 = jnp.dot(h1.astype(jnp.bfloat16), w2.astype(jnp.bfloat16),
                 preferred_element_type=jnp.float32) + b2
    h2 = jnp.maximum(h2, 0.0)
    return jax.nn.sigmoid(h2 @ w3 + b3)


if __name__ == "__main__":
    key = jax.random.PRNGKey(0)
    kx, kp = jax.random.split(key)

    batch_size, z_dim = 8, 32
    x = jax.random.normal(kx, (batch_size, z_dim), jnp.float32)
    params = init_params(kp, z_dim)

    out = discriminator_z(x, params)
    jax.block_until_ready(out)
    assert out.shape == (batch_size, 1)

    ref_b = reference_bf16(x, params)
    ref_f = reference_f32(x, params)
    assert jnp.allclose(out, ref_b, atol=2e-3, rtol=2e-3), float(jnp.max(jnp.abs(out - ref_b)))
    assert jnp.allclose(out, ref_f, atol=5e-2, rtol=5e-2), float(jnp.max(jnp.abs(out - ref_f)))
    print("KERNEL_OK")
</pallas_src>

<mosaic_0001>
module attributes {stable_mosaic.version = 11 : i64} {
  func.func @discriminator_z_kernel(%arg0: i32, %arg1: memref<8x32xbf16, #tpu.memory_space<vmem>>, %arg2: memref<32x512xbf16, #tpu.memory_space<vmem>>, %arg3: memref<1x512xf32, #tpu.memory_space<vmem>>, %arg4: memref<512x512xbf16, #tpu.memory_space<vmem>>, %arg5: memref<1x512xf32, #tpu.memory_space<vmem>>, %arg6: memref<1x512xf32, #tpu.memory_space<vmem>>, %arg7: memref<1xf32, #tpu.memory_space<smem>>, %arg8: memref<8x1xf32, #tpu.memory_space<vmem>>) attributes {dimension_semantics = [#tpu.dimension_semantics<parallel>], iteration_bounds = array<i64: 1>, scalar_prefetch = 0 : i64, scratch_operands = 0 : i64, tpu.core_type = #tpu.core_type<tc>, window_params = [{transform_indices = @transform_0, window_bounds = array<i64: 8, 32>}, {pipeline_mode = #tpu.pipeline_mode<synchronous>, transform_indices = @transform_1, window_bounds = array<i64: 32, 512>}, {pipeline_mode = #tpu.pipeline_mode<synchronous>, transform_indices = @transform_2, window_bounds = array<i64: 1, 512>}, {pipeline_mode = #tpu.pipeline_mode<synchronous>, transform_indices = @transform_3, window_bounds = array<i64: 512, 512>}, {pipeline_mode = #tpu.pipeline_mode<synchronous>, transform_indices = @transform_4, window_bounds = array<i64: 1, 512>}, {pipeline_mode = #tpu.pipeline_mode<synchronous>, transform_indices = @transform_5, window_bounds = array<i64: 1, 512>}, {transform_indices = @transform_6, window_bounds = array<i64: 1>}, {transform_indices = @transform_7, window_bounds = array<i64: 8, 1>}]} {
    %c0 = arith.constant 0 : index
    %c0_0 = arith.constant 0 : index
    %0 = vector.load %arg1[%c0, %c0_0] : memref<8x32xbf16, #tpu.memory_space<vmem>>, vector<8x32xbf16>
    %c0_1 = arith.constant 0 : index
    %c0_2 = arith.constant 0 : index
    %1 = vector.load %arg2[%c0_1, %c0_2] : memref<32x512xbf16, #tpu.memory_space<vmem>>, vector<32x512xbf16>
    %cst = arith.constant dense<0.000000e+00> : vector<8x512xf32>
    %2 = tpu.matmul %0, %1, %cst {dimension_numbers = #tpu.dot_dimension_numbers<[1], [0], [0], [1], [0, 0, 1, 1], [], []>} : vector<8x32xbf16>, vector<32x512xbf16>, vector<8x512xf32> -> vector<8x512xf32>
    %c0_3 = arith.constant 0 : index
    %c0_4 = arith.constant 0 : index
    %3 = vector.load %arg3[%c0_3, %c0_4] : memref<1x512xf32, #tpu.memory_space<vmem>>, vector<1x512xf32>
    %4 = vector.broadcast %3 : vector<1x512xf32> to vector<8x512xf32>
    %5 = arith.addf %2, %4 : vector<8x512xf32>
    %cst_5 = arith.constant 0.000000e+00 : f32
    %6 = vector.broadcast %cst_5 : f32 to vector<8x512xf32>
    %7 = arith.maximumf %5, %6 : vector<8x512xf32>
    %8 = arith.truncf %7 : vector<8x512xf32> to vector<8x512xbf16>
    %c0_6 = arith.constant 0 : index
    %c0_7 = arith.constant 0 : index
    %9 = vector.load %arg4[%c0_6, %c0_7] : memref<512x512xbf16, #tpu.memory_space<vmem>>, vector<512x512xbf16>
    %cst_8 = arith.constant dense<0.000000e+00> : vector<8x512xf32>
    %10 = tpu.matmul %8, %9, %cst_8 {dimension_numbers = #tpu.dot_dimension_numbers<[1], [0], [0], [1], [0, 0, 1, 1], [], []>} : vector<8x512xbf16>, vector<512x512xbf16>, vector<8x512xf32> -> vector<8x512xf32>
    %c0_9 = arith.constant 0 : index
    %c0_10 = arith.constant 0 : index
    %11 = vector.load %arg5[%c0_9, %c0_10] : memref<1x512xf32, #tpu.memory_space<vmem>>, vector<1x512xf32>
    %12 = vector.broadcast %11 : vector<1x512xf32> to vector<8x512xf32>
    %13 = arith.addf %10, %12 : vector<8x512xf32>
    %cst_11 = arith.constant 0.000000e+00 : f32
    %14 = vector.broadcast %cst_11 : f32 to vector<8x512xf32>
    %15 = arith.maximumf %13, %14 : vector<8x512xf32>
    %c0_12 = arith.constant 0 : index
    %c0_13 = arith.constant 0 : index
    %16 = vector.load %arg6[%c0_12, %c0_13] : memref<1x512xf32, #tpu.memory_space<vmem>>, vector<1x512xf32>
    %17 = vector.broadcast %16 : vector<1x512xf32> to vector<8x512xf32>
    %18 = arith.mulf %15, %17 : vector<8x512xf32>
    %cst_14 = arith.constant dense<0.000000e+00> : vector<8xf32>
    %19 = vector.multi_reduction <add>, %18, %cst_14 [1] : vector<8x512xf32> to vector<8xf32>
    %20 = vector.shape_cast %19 : vector<8xf32> to vector<8x1xf32>
    %c0_15 = arith.constant 0 : index
    %21 = memref.load %arg7[%c0_15] : memref<1xf32, #tpu.memory_space<smem>>
    %22 = vector.broadcast %21 : f32 to vector<8x1xf32>
    %23 = arith.addf %20, %22 : vector<8x1xf32>
    %cst_16 = arith.constant 0.000000e+00 : f32
    %24 = vector.broadcast %cst_16 : f32 to vector<8x1xf32>
    %25 = arith.subf %24, %23 : vector<8x1xf32>
    %26 = math.exp %25 : vector<8x1xf32>
    %cst_17 = arith.constant 1.000000e+00 : f32
    %27 = vector.broadcast %cst_17 : f32 to vector<8x1xf32>
    %28 = arith.addf %27, %26 : vector<8x1xf32>
    %29 = tpu.reciprocal %28 {approx = true} : vector<8x1xf32> -> vector<8x1xf32>
    %c0_18 = arith.constant 0 : index
    %c0_19 = arith.constant 0 : index
    %30 = vector.load %arg8[%c0_18, %c0_19] : memref<8x1xf32, #tpu.memory_space<vmem>>, vector<8x1xf32>
    tpu.vector_store %arg8[%c0_18, %c0_19], %29 {strides = array<i32>} : memref<8x1xf32, #tpu.memory_space<vmem>>, vector<8x1xf32>,
    return
  }
  func.func @transform_0(%arg0: i32) -> (i32, i32) {
    %c0_i32 = arith.constant 0 : i32
    %c0_i32_0 = arith.constant 0 : i32
    return %arg0, %c0_i32 : i32, i32
  }
  func.func @transform_1(%arg0: i32) -> (i32, i32) {
    %c0_i32 = arith.constant 0 : i32
    %c0_i32_0 = arith.constant 0 : i32
    %c0_i32_1 = arith.constant 0 : i32
    return %c0_i32, %c0_i32_0 : i32, i32
  }
  func.func @transform_2(%arg0: i32) -> (i32, i32) {
    %c0_i32 = arith.constant 0 : i32
    %c0_i32_0 = arith.constant 0 : i32
    %c0_i32_1 = arith.constant 0 : i32
    return %c0_i32, %c0_i32_0 : i32, i32
  }
  func.func @transform_3(%arg0: i32) -> (i32, i32) {
    %c0_i32 = arith.constant 0 : i32
    %c0_i32_0 = arith.constant 0 : i32
    %c0_i32_1 = arith.constant 0 : i32
    return %c0_i32, %c0_i32_0 : i32, i32
  }
  func.func @transform_4(%arg0: i32) -> (i32, i32) {
    %c0_i32 = arith.constant 0 : i32
    %c0_i32_0 = arith.constant 0 : i32
    %c0_i32_1 = arith.constant 0 : i32
    return %c0_i32, %c0_i32_0 : i32, i32
  }
  func.func @transform_5(%arg0: i32) -> (i32, i32) {
    %c0_i32 = arith.constant 0 : i32
    %c0_i32_0 = arith.constant 0 : i32
    %c0_i32_1 = arith.constant 0 : i32
    return %c0_i32, %c0_i32_0 : i32, i32
  }
  func.func @transform_6(%arg0: i32) -> i32 {
    %c0_i32 = arith.constant 0 : i32
    %c0_i32_0 = arith.constant 0 : i32
    return %c0_i32 : i32
  }
  func.func @transform_7(%arg0: i32) -> (i32, i32) {
    %c0_i32 = arith.constant 0 : i32
    %c0_i32_0 = arith.constant 0 : i32
    return %arg0, %c0_i32 : i32, i32
  }
}

</mosaic_0001>

<llo_original>
// kernel: tpu_custom_call.1
$region0: #{tpu_custom_call.1}
  #allocation0 [shape = 'u32[]', space=smem, size = 0x4, offset = 0x4, fixed_abs, tag = 'smem constant byte address 0x4 - core index']
  #allocation1 [shape = 'u32[144,128]{1,0:T(1,128)}', space=vmem, size = 0x12000, scoped, tag = 'internal scratch']
  #allocation2 [shape = 'f32[1]{0:T(128)S(6)}', space=smem, size = 0x200, scoped, tag = 'scoped memory for tpu_custom_call.1']
  %s0 = inlined_call_operand.hbm [shape: bf16[8,32], index: 0, kind: input, shape index: {}]
  %s1 = inlined_call_operand.hbm [shape: bf16[32,512], index: 1, kind: input, shape index: {}]
  %s2 = inlined_call_operand.vmem [shape: f32[1,512], index: 2, kind: input, shape index: {}]
  %s3 = inlined_call_operand.hbm [shape: bf16[512,512], index: 3, kind: input, shape index: {}]
  %s4 = inlined_call_operand.vmem [shape: f32[1,512], index: 4, kind: input, shape index: {}]
  %s5 = inlined_call_operand.vmem [shape: f32[1,512], index: 5, kind: input, shape index: {}]
  %s6 = inlined_call_operand.<no memory space> [shape: f32[1], index: 6, kind: input, shape index: {}]
  %s7 = inlined_call_operand.vmem [shape: f32[8,1], index: 7, kind: output, shape index: {}]
  %s8 = sld [smem:[#allocation0]]
  $region50: #{tpu_custom_call.1} parent=0
    _
  %s10 = ssub.s32 1, %s8
  %s11 = scalar_select 0, %s10, %s8
  %12 = sst [smem:[#allocation2]] %s6
  $region1: #{tpu_custom_call.1} parent=0
    #allocation3 [shape = 'u8[2048]{0}', space=vmem, size = 0x800, scoped, tag = 'input window, operand 0, single buffered']
    #allocation4 [shape = 's32[1]{0}', space=sflag, size = 0x4, scoped, tag = 'scoped memory for tpu_custom_call.1']
    #allocation5 [shape = 'u8[32768]{0}', space=vmem, size = 0x8000, scoped, tag = 'input window, operand 1, single buffered']
    #allocation6 [shape = 's32[1]{0}', space=sflag, size = 0x4, scoped, tag = 'scoped memory for tpu_custom_call.1']
    #allocation7 [shape = 'u8[524288]{0}', space=vmem, size = 0x80000, scoped, tag = 'input window, operand 3, single buffered']
    %13 = vsyncpa [#allocation4], 0
    %14 = vsyncpa [#allocation6], 0
    // Predicated region
    $region2: #{tpu_custom_call.1} parent=1 // pred_check
      _
    $region3: #{tpu_custom_call.1} parent=1 // pred_check_branch
      %16 = sbr.rel (0) target = $region5
    $region4: #{tpu_custom_call.1} parent=1 // pred_region
      %s18 = ssub.s32 64, 64
      %19 = vsyncadd [#allocation4], %s18
      %s21 = sshll.u32 [#allocation3], 4
      %s22 = int_to_ptr.vmem [resolvable:$true] %s21
      %24 = dma.hbm_to_vmem [thread:$0]  %s0, 64, %s22, [#allocation4]
    $region5: #{tpu_custom_call.1} parent=1 // pred_fallthru
      _
    // Predicated region
    $region6: #{tpu_custom_call.1} parent=1 // pred_check
      _
    $region7: #{tpu_custom_call.1} parent=1 // pred_check_branch
      %26 = sbr.rel (0) target = $region9
    $region8: #{tpu_custom_call.1} parent=1 // pred_region
      %s28 = ssub.s32 1024, 1024
      %29 = vsyncadd [#allocation6], %s28
      %s30 = sshll.u32 [#allocation5], 4
      %s31 = int_to_ptr.vmem [resolvable:$true] %s30
      %36 = dma.hbm_to_vmem [thread:$0]  %s1, 1024, %s31, [#allocation6], 256, 256, 16
    $region9: #{tpu_custom_call.1} parent=1 // pred_fallthru
      _
    // Predicated region
    $region10: #{tpu_custom_call.1} parent=1 // pred_check
      _
    $region11: #{tpu_custom_call.1} parent=1 // pred_check_branch
      %38 = sbr.rel (0) target = $region13
    $region12: #{tpu_custom_call.1} parent=1 // pred_region
      _
    $region13: #{tpu_custom_call.1} parent=1 // pred_fallthru
      _
    // Predicated region
    $region14: #{tpu_custom_call.1} parent=1 // pred_check
      _
    $region15: #{tpu_custom_call.1} parent=1 // pred_check_branch
      %40 = sbr.rel (0) target = $region17
    $region16: #{tpu_custom_call.1} parent=1 // pred_region
      %s42 = ssub.s32 16384, 16384
      %43 = vsyncadd [#allocation6], %s42
      %s44 = sshll.u32 [#allocation7], 4
      %s45 = int_to_ptr.vmem [resolvable:$true] %s44
      %50 = dma.hbm_to_vmem [thread:$0]  %s3, 16384, %s45, [#allocation6], 256, 256, 16
    $region17: #{tpu_custom_call.1} parent=1 // pred_fallthru
      _
    // Predicated region
    $region18: #{tpu_custom_call.1} parent=1 // pred_check
      _
    $region19: #{tpu_custom_call.1} parent=1 // pred_check_branch
      %52 = sbr.rel (0) target = $region21
    $region20: #{tpu_custom_call.1} parent=1 // pred_region
      _
    $region21: #{tpu_custom_call.1} parent=1 // pred_fallthru
      _
    // Predicated region
    $region22: #{tpu_custom_call.1} parent=1 // pred_check
      _
    $region23: #{tpu_custom_call.1} parent=1 // pred_check_branch
      %54 = sbr.rel (0) target = $region25
    $region24: #{tpu_custom_call.1} parent=1 // pred_region
      _
    $region25: #{tpu_custom_call.1} parent=1 // pred_fallthru
      _
    // Predicated region
    $region26: #{tpu_custom_call.1} parent=1 // pred_check
      _
    $region27: #{tpu_custom_call.1} parent=1 // pred_check_branch
      %56 = sbr.rel (0) target = $region29
    $region28: #{tpu_custom_call.1} parent=1 // pred_region
      _
    $region29: #{tpu_custom_call.1} parent=1 // pred_fallthru
      _
    // Predicated region
    $region30: #{tpu_custom_call.1} parent=1 // pred_check
      _
    $region31: #{tpu_custom_call.1} parent=1 // pred_check_branch
      %58 = sbr.rel (0) target = $region33
    $region32: #{tpu_custom_call.1} parent=1 // pred_region
      %59 = dma.done [#allocation4], 64
    $region33: #{tpu_custom_call.1} parent=1 // pred_fallthru
      _
    // Predicated region
    $region34: #{tpu_custom_call.1} parent=1 // pred_check
      _
    $region35: #{tpu_custom_call.1} parent=1 // pred_check_branch
      %61 = sbr.rel (0) target = $region37
    $region36: #{tpu_custom_call.1} parent=1 // pred_region
      %62 = dma.done [#allocation6], 1024
    $region37: #{tpu_custom_call.1} parent=1 // pred_fallthru
      _
    // Predicated region
    $region38: #{tpu_custom_call.1} parent=1 // pred_check
      _
    $region39: #{tpu_custom_call.1} parent=1 // pred_check_branch
      %64 = sbr.rel (0) target = $region41
    $region40: #{tpu_custom_call.1} parent=1 // pred_region
      %65 = dma.done [#allocation6], 16384
    $region41: #{tpu_custom_call.1} parent=1 // pred_fallthru
      _
    %v67 = vld [vmem:[#allocation3] sm:$0xf]
    %v68 = vld [vmem:[#allocation5] sm:$0xff]
    %v69 = vld [vmem:[#allocation5 + $0x8] sm:$0xff]
    %v70 = vld [vmem:[#allocation5 + $0x10] sm:$0xff]
    %v71 = vld [vmem:[#allocation5 + $0x18] sm:$0xff]
    %v72 = vld [vmem:[#allocation5 + $0x20] sm:$0xff]
    %v73 = vld [vmem:[#allocation5 + $0x28] sm:$0xff]
    %v74 = vld [vmem:[#allocation5 + $0x30] sm:$0xff]
    %v75 = vld [vmem:[#allocation5 + $0x38] sm:$0xff]
    %v76 = vld [vmem:[%s2] sm:$0xf]
    %v78 = vlaneseq
    %v79 = vshrl.u32 %v78, 7
    %v80 = vsub.s32 0, %v79
    %v81 = vrot.slane %v76, %v80
    %v82 = vlaneseq
    %v83 = vshrl.u32 %v82, 7
    %v84 = vsub.s32 1, %v83
    %v85 = vrot.slane %v76, %v84
    %v86 = vlaneseq
    %v87 = vshrl.u32 %v86, 7
    %v88 = vsub.s32 2, %v87
    %v89 = vrot.slane %v76, %v88
    %v90 = vlaneseq
    %v91 = vshrl.u32 %v90, 7
    %v92 = vsub.s32 3, %v91
    %v93 = vrot.slane %v76, %v92
    %v106 = vunpack.c.l.b16 %v68
    %v107 = vunpack.c.h.b16 %v68
    %v108 = vunpack.c.l.b16 %v69
    %v109 = vunpack.c.h.b16 %v69
    %v110 = vunpack.c.l.b16 %v70
    %v111 = vunpack.c.h.b16 %v70
    %v112 = vunpack.c.l.b16 %v71
    %v113 = vunpack.c.h.b16 %v71
    %v114 = vunpack.c.l.b16 %v72
    %v115 = vunpack.c.h.b16 %v72
    %v116 = vunpack.c.l.b16 %v73
    %v117 = vunpack.c.h.b16 %v73
    %v118 = vunpack.c.l.b16 %v74
    %v119 = vunpack.c.h.b16 %v74
    %v120 = vunpack.c.l.b16 %v75
    %v121 = vunpack.c.h.b16 %v75
    %v122 = vpack.c.b16 %v110, %v106
    %v123 = vpack.c.b16 %v111, %v107
    %v124 = vpack.c.b16 %v112, %v108
    %v125 = vpack.c.b16 %v113, %v109
    %v126 = vpack.c.b16 %v118, %v114
    %v127 = vpack.c.b16 %v119, %v115
    %v128 = vpack.c.b16 %v120, %v116
    %v129 = vpack.c.b16 %v121, %v117
    %vm138 = vcmask 261120
    %v140 = vsel %vm138, %v67, 0
    %142 = vmatprep.subr.bf16.mxu0 %v123
    %143 = vmatpush1.bf16.msra.mxu0 %v122
    %144 = vmatprep.subr.bf16.mxu0 %v127
    %145 = vmatpush1.bf16.msra.mxu0 %v126
    %146 = vmatprep.subr.bf16.mxu0 0
    %147 = vmatpush1.bf16.msra.mxu0 0
    %148 = vmatprep.subr.bf16.mxu0 0
    %149 = vmatpush1.bf16.msra.mxu0 0
    %150 = vmatprep.subr.bf16.mxu0 0
    %151 = vmatpush1.bf16.msra.mxu0 0
    %152 = vmatprep.subr.bf16.mxu0 0
    %153 = vmatpush1.bf16.msra.mxu0 0
    %154 = vmatprep.subr.bf16.mxu0 0
    %155 = vmatpush1.bf16.msra.mxu0 0
    %156 = vmatprep.subr.bf16.mxu0 0
    %157 = vmatpush1.bf16.msra.mxu0 0
    %158 = vmatprep.subr.bf16.mxu0 0
    %159 = vmatpush1.bf16.msra.mxu0 0
    %160 = vmatprep.subr.bf16.mxu0 0
    %161 = vmatpush1.bf16.msra.mxu0 0
    %162 = vmatprep.subr.bf16.mxu0 0
    %163 = vmatpush1.bf16.msra.mxu0 0
    %164 = vmatprep.subr.bf16.mxu0 0
    %165 = vmatpush1.bf16.msra.mxu0 0
    %166 = vmatprep.subr.bf16.mxu0 0
    %167 = vmatpush1.bf16.msra.mxu0 0
    %168 = vmatprep.subr.bf16.mxu0 0
    %169 = vmatpush1.bf16.msra.mxu0 0
    %170 = vmatprep.subr.bf16.mxu0 0
    %171 = vmatpush1.bf16.msra.mxu0 0
    %172 = vmatprep.subr.bf16.mxu0 0
    %173 = vmatpush1.bf16.msra.mxu0 0
    %174 = vmatprep.mubr.bf16.mxu0 0
    %175 = vmatmul.mubr.bf16.gmra.mrb[0].mxu0 %v140
    %v176 = vpop.f32.mrb[0].mxu0
    %v177 = vadd.f32 %v81, %v176
    %v178 = vpop.f32.mrb[0].mxu0
    %v179 = vadd.f32 %v85, %v178
    %v180 = vpop.f32.mrb[0].mxu0
    %v181 = vpop.f32.mrb[0].mxu0
    %182 = vdwg.mxu0
    %183 = vmatprep.subr.bf16.mxu0 %v125
    %184 = vmatpush1.bf16.msra.mxu0 %v124
    %185 = vmatprep.subr.bf16.mxu0 %v129
    %186 = vmatpush1.bf16.msra.mxu0 %v128
    %187 = vmatprep.subr.bf16.mxu0 0
    %188 = vmatpush1.bf16.msra.mxu0 0
    %189 = vmatprep.subr.bf16.mxu0 0
    %190 = vmatpush1.bf16.msra.mxu0 0
    %191 = vmatprep.subr.bf16.mxu0 0
    %192 = vmatpush1.bf16.msra.mxu0 0
    %193 = vmatprep.subr.bf16.mxu0 0
    %194 = vmatpush1.bf16.msra.mxu0 0
    %195 = vmatprep.subr.bf16.mxu0 0
    %196 = vmatpush1.bf16.msra.mxu0 0
    %197 = vmatprep.subr.bf16.mxu0 0
    %198 = vmatpush1.bf16.msra.mxu0 0
    %199 = vmatprep.subr.bf16.mxu0 0
    %200 = vmatpush1.bf16.msra.mxu0 0
    %201 = vmatprep.subr.bf16.mxu0 0
    %202 = vmatpush1.bf16.msra.mxu0 0
    %203 = vmatprep.subr.bf16.mxu0 0
    %204 = vmatpush1.bf16.msra.mxu0 0
    %205 = vmatprep.subr.bf16.mxu0 0
    %206 = vmatpush1.bf16.msra.mxu0 0
    %207 = vmatprep.subr.bf16.mxu0 0
    %208 = vmatpush1.bf16.msra.mxu0 0
    %209 = vmatprep.subr.bf16.mxu0 0
    %210 = vmatpush1.bf16.msra.mxu0 0
    %211 = vmatprep.subr.bf16.mxu0 0
    %212 = vmatpush1.bf16.msra.mxu0 0
    %213 = vmatprep.subr.bf16.mxu0 0
    %214 = vmatpush1.bf16.msra.mxu0 0
    %215 = vmatprep.mubr.bf16.mxu0 0
    %216 = vmatmul.mubr.bf16.gmra.mrb[0].mxu0 %v140
    %v217 = vpop.f32.mrb[0].mxu0
    %v218 = vadd.f32 %v89, %v217
    %v219 = vpop.f32.mrb[0].mxu0
    %v220 = vadd.f32 %v93, %v219
    %v221 = vpop.f32.mrb[0].mxu0
    %v222 = vpop.f32.mrb[0].mxu0
    %223 = vdwg.mxu0
    %v224 = vmax.f32 %v177, 0.0
    %v225 = vmax.f32 %v179, 0.0
    %v226 = vmax.f32 %v218, 0.0
    %v227 = vmax.f32 %v220, 0.0
    %v228 = vpack.c.bf16 %v224, %v224
    %v229 = vpack.c.bf16 %v225, %v225
    %v230 = vpack.c.bf16 %v226, %v226
    %v231 = vpack.c.bf16 %v227, %v227
    %v232 = vld [vmem:[#allocation7] sm:$0xff]
    %v233 = vld [vmem:[#allocation7 + $0x8] sm:$0xff]
    %v234 = vld [vmem:[#allocation7 + $0x10] sm:$0xff]
    %v235 = vld [vmem:[#allocation7 + $0x18] sm:$0xff]
    %v236 = vld [vmem:[#allocation7 + $0x20] sm:$0xff]
    %v237 = vld [vmem:[#allocation7 + $0x28] sm:$0xff]
    %v238 = vld [vmem:[#allocation7 + $0x30] sm:$0xff]
    %v239 = vld [vmem:[#allocation7 + $0x38] sm:$0xff]
    %v240 = vld [vmem:[#allocation7 + $0x40] sm:$0xff]
    %v241 = vld [vmem:[#allocation7 + $0x48] sm:$0xff]
    %v242 = vld [vmem:[#allocation7 + $0x50] sm:$0xff]
    %v243 = vld [vmem:[#allocation7 + $0x58] sm:$0xff]
    %v244 = vld [vmem:[#allocation7 + $0x60] sm:$0xff]
    %v245 = vld [vmem:[#allocation7 + $0x68] sm:$0xff]
    %v246 = vld [vmem:[#allocation7 + $0x70] sm:$0xff]
    %v247 = vld [vmem:[#allocation7 + $0x78] sm:$0xff]
    %v248 = vld [vmem:[#allocation7 + $0x80] sm:$0xff]
    %v249 = vld [vmem:[#allocation7 + $0x88] sm:$0xff]
    %v250 = vld [vmem:[#allocation7 + $0x90] sm:$0xff]
    %v251 = vld [vmem:[#allocation7 + $0x98] sm:$0xff]
    %v252 = vld [vmem:[#allocation7 + $0xa0] sm:$0xff]
    %v253 = vld [vmem:[#allocation7 + $0xa8] sm:$0xff]
    %v254 = vld [vmem:[#allocation7 + $0xb0] sm:$0xff]
    %v255 = vld [vmem:[#allocation7 + $0xb8] sm:$0xff]
    %v256 = vld [vmem:[#allocation7 + $0xc0] sm:$0xff]
    %v257 = vld [vmem:[#allocation7 + $0xc8] sm:$0xff]
    %v258 = vld [vmem:[#allocation7 + $0xd0] sm:$0xff]
    %v259 = vld [vmem:[#allocation7 + $0xd8] sm:$0xff]
    %v260 = vld [vmem:[#allocation7 + $0xe0] sm:$0xff]
    %v261 = vld [vmem:[#allocation7 + $0xe8] sm:$0xff]
    %v262 = vld [vmem:[#allocation7 + $0xf0] sm:$0xff]
    %v263 = vld [vmem:[#allocation7 + $0xf8] sm:$0xff]
    %v264 = vld [vmem:[#allocation7 + $0x100] sm:$0xff]
    %v265 = vld [vmem:[#allocation7 + $0x108] sm:$0xff]
    %v266 = vld [vmem:[#allocation7 + $0x110] sm:$0xff]
    %v267 = vld [vmem:[#allocation7 + $0x118] sm:$0xff]
    %v268 = vld [vmem:[#allocation7 + $0x120] sm:$0xff]
    %v269 = vld [vmem:[#allocation7 + $0x128] sm:$0xff]
    %v270 = vld [vmem:[#allocation7 + $0x130] sm:$0xff]
    %v271 = vld [vmem:[#allocation7 + $0x138] sm:$0xff]
    %v272 = vld [vmem:[#allocation7 + $0x140] sm:$0xff]
    %v273 = vld [vmem:[#allocation7 + $0x148] sm:$0xff]
    %v274 = vld [vmem:[#allocation7 + $0x150] sm:$0xff]
    %v275 = vld [vmem:[#allocation7 + $0x158] sm:$0xff]
    %v276 = vld [vmem:[#allocation7 + $0x160] sm:$0xff]
    %v277 = vld [vmem:[#allocation7 + $0x168] sm:$0xff]
    %v278 = vld [vmem:[#allocation7 + $0x170] sm:$0xff]
    %v279 = vld [vmem:[#allocation7 + $0x178] sm:$0xff]
    %v280 = vld [vmem:[#allocation7 + $0x180] sm:$0xff]
    %v281 = vld [vmem:[#allocation7 + $0x188] sm:$0xff]
    %v282 = vld [vmem:[#allocation7 + $0x190] sm:$0xff]
    %v283 = vld [vmem:[#allocation7 + $0x198] sm:$0xff]
    %v284 = vld [vmem:[#allocation7 + $0x1a0] sm:$0xff]
    %v285 = vld [vmem:[#allocation7 + $0x1a8] sm:$0xff]
    %v286 = vld [vmem:[#allocation7 + $0x1b0] sm:$0xff]
    %v287 = vld [vmem:[#allocation7 + $0x1b8] sm:$0xff]
    %v288 = vld [vmem:[#allocation7 + $0x1c0] sm:$0xff]
    %v289 = vld [vmem:[#allocation7 + $0x1c8] sm:$0xff]
    %v290 = vld [vmem:[#allocation7 + $0x1d0] sm:$0xff]
    %v291 = vld [vmem:[#allocation7 + $0x1d8] sm:$0xff]
    %v292 = vld [vmem:[#allocation7 + $0x1e0] sm:$0xff]
    %v293 = vld [vmem:[#allocation7 + $0x1e8] sm:$0xff]
    %v294 = vld [vmem:[#allocation7 + $0x1f0] sm:$0xff]
    %v295 = vld [vmem:[#allocation7 + $0x1f8] sm:$0xff]
    %v296 = vld [vmem:[#allocation7 + $0x200] sm:$0xff]
    %v297 = vld [vmem:[#allocation7 + $0x208] sm:$0xff]
    %v298 = vld [vmem:[#allocation7 + $0x210] sm:$0xff]
    %v299 = vld [vmem:[#allocation7 + $0x218] sm:$0xff]
    %v300 = vld [vmem:[#allocation7 + $0x220] sm:$0xff]
    %v301 = vld [vmem:[#allocation7 + $0x228] sm:$0xff]
    %v302 = vld [vmem:[#allocation7 + $0x230] sm:$0xff]
    %v303 = vld [vmem:[#allocation7 + $0x238] sm:$0xff]
    %v304 = vld [vmem:[#allocation7 + $0x240] sm:$0xff]
    %v305 = vld [vmem:[#allocation7 + $0x248] sm:$0xff]
    %v306 = vld [vmem:[#allocation7 + $0x250] sm:$0xff]
    %v307 = vld [vmem:[#allocation7 + $0x258] sm:$0xff]
    %v308 = vld [vmem:[#allocation7 + $0x260] sm:$0xff]
    %v309 = vld [vmem:[#allocation7 + $0x268] sm:$0xff]
    %v310 = vld [vmem:[#allocation7 + $0x270] sm:$0xff]
    %v311 = vld [vmem:[#allocation7 + $0x278] sm:$0xff]
    %v312 = vld [vmem:[#allocation7 + $0x280] sm:$0xff]
    %v313 = vld [vmem:[#allocation7 + $0x288] sm:$0xff]
    %v314 = vld [vmem:[#allocation7 + $0x290] sm:$0xff]
    %v315 = vld [vmem:[#allocation7 + $0x298] sm:$0xff]
    %v316 = vld [vmem:[#allocation7 + $0x2a0] sm:$0xff]
    %v317 = vld [vmem:[#allocation7 + $0x2a8] sm:$0xff]
    %v318 = vld [vmem:[#allocation7 + $0x2b0] sm:$0xff]
    %v319 = vld [vmem:[#allocation7 + $0x2b8] sm:$0xff]
    %v320 = vld [vmem:[#allocation7 + $0x2c0] sm:$0xff]
    %v321 = vld [vmem:[#allocation7 + $0x2c8] sm:$0xff]
    %v322 = vld [vmem:[#allocation7 + $0x2d0] sm:$0xff]
    %v323 = vld [vmem:[#allocation7 + $0x2d8] sm:$0xff]
    %v324 = vld [vmem:[#allocation7 + $0x2e0] sm:$0xff]
    %v325 = vld [vmem:[#allocation7 + $0x2e8] sm:$0xff]
    %v326 = vld [vmem:[#allocation7 + $0x2f0] sm:$0xff]
    %v327 = vld [vmem:[#allocation7 + $0x2f8] sm:$0xff]
    %v328 = vld [vmem:[#allocation7 + $0x300] sm:$0xff]
    %v329 = vld [vmem:[#allocation7 + $0x308] sm:$0xff]
    %v330 = vld [vmem:[#allocation7 + $0x310] sm:$0xff]
    %v331 = vld [vmem:[#allocation7 + $0x318] sm:$0xff]
    %v332 = vld [vmem:[#allocation7 + $0x320] sm:$0xff]
    %v333 = vld [vmem:[#allocation7 + $0x328] sm:$0xff]
    %v334 = vld [vmem:[#allocation7 + $0x330] sm:$0xff]
    %v335 = vld [vmem:[#allocation7 + $0x338] sm:$0xff]
    %v336 = vld [vmem:[#allocation7 + $0x340] sm:$0xff]
    %v337 = vld [vmem:[#allocation7 + $0x348] sm:$0xff]
    %v338 = vld [vmem:[#allocation7 + $0x350] sm:$0xff]
    %v339 = vld [vmem:[#allocation7 + $0x358] sm:$0xff]
    %v340 = vld [vmem:[#allocation7 + $0x360] sm:$0xff]
    %v341 = vld [vmem:[#allocation7 + $0x368] sm:$0xff]
    %v342 = vld [vmem:[#allocation7 + $0x370] sm:$0xff]
    %v343 = vld [vmem:[#allocation7 + $0x378] sm:$0xff]
    %v344 = vld [vmem:[#allocation7 + $0x380] sm:$0xff]
    %v345 = vld [vmem:[#allocation7 + $0x388] sm:$0xff]
    %v346 = vld [vmem:[#allocation7 + $0x390] sm:$0xff]
    %v347 = vld [vmem:[#allocation7 + $0x398] sm:$0xff]
    %v348 = vld [vmem:[#allocation7 + $0x3a0] sm:$0xff]
    %v349 = vld [vmem:[#allocation7 + $0x3a8] sm:$0xff]
    %v350 = vld [vmem:[#allocation7 + $0x3b0] sm:$0xff]
    %v351 = vld [vmem:[#allocation7 + $0x3b8] sm:$0xff]
    %v352 = vld [vmem:[#allocation7 + $0x3c0] sm:$0xff]
    %v353 = vld [vmem:[#allocation7 + $0x3c8] sm:$0xff]
    %v354 = vld [vmem:[#allocation7 + $0x3d0] sm:$0xff]
    %v355 = vld [vmem:[#allocation7 + $0x3d8] sm:$0xff]
    %v356 = vld [vmem:[#allocation7 + $0x3e0] sm:$0xff]
    %v357 = vld [vmem:[#allocation7 + $0x3e8] sm:$0xff]
    %v358 = vld [vmem:[#allocation7 + $0x3f0] sm:$0xff]
    %v359 = vld [vmem:[#allocation7 + $0x3f8] sm:$0xff]
    %v360 = vld [vmem:[%s4] sm:$0xf]
    %v362 = vlaneseq
    %v363 = vshrl.u32 %v362, 7
    %v364 = vsub.s32 0, %v363
    %v365 = vrot.slane %v360, %v364
    %v366 = vlaneseq
    %v367 = vshrl.u32 %v366, 7
    %v368 = vsub.s32 1, %v367
    %v369 = vrot.slane %v360, %v368
    %v370 = vlaneseq
    %v371 = vshrl.u32 %v370, 7
    %v372 = vsub.s32 2, %v371
    %v373 = vrot.slane %v360, %v372
    %v374 = vlaneseq
    %v375 = vshrl.u32 %v374, 7
    %v376 = vsub.s32 3, %v375
    %v377 = vrot.slane %v360, %v376
    %v510 = vunpack.c.l.b16 %v232
    %v511 = vunpack.c.h.b16 %v232
    %v512 = vunpack.c.l.b16 %v233
    %v513 = vunpack.c.h.b16 %v233
    %v514 = vunpack.c.l.b16 %v234
    %v515 = vunpack.c.h.b16 %v234
    %v516 = vunpack.c.l.b16 %v235
    %v517 = vunpack.c.h.b16 %v235
    %v518 = vunpack.c.l.b16 %v236
    %v519 = vunpack.c.h.b16 %v236
    %v520 = vunpack.c.l.b16 %v237
    %v521 = vunpack.c.h.b16 %v237
    %v522 = vunpack.c.l.b16 %v238
    %v523 = vunpack.c.h.b16 %v238
    %v524 = vunpack.c.l.b16 %v239
    %v525 = vunpack.c.h.b16 %v239
    %v526 = vunpack.c.l.b16 %v240
    %v527 = vunpack.c.h.b16 %v240
    %v528 = vunpack.c.l.b16 %v241
    %v529 = vunpack.c.h.b16 %v241
    %v530 = vunpack.c.l.b16 %v242
    %v531 = vunpack.c.h.b16 %v242
    %v532 = vunpack.c.l.b16 %v243
    %v533 = vunpack.c.h.b16 %v243
    %v534 = vunpack.c.l.b16 %v244
    %v535 = vunpack.c.h.b16 %v244
    %v536 = vunpack.c.l.b16 %v245
    %v537 = vunpack.c.h.b16 %v245
    %v538 = vunpack.c.l.b16 %v246
    %v539 = vunpack.c.h.b16 %v246
    %v540 = vunpack.c.l.b16 %v247
    %v541 = vunpack.c.h.b16 %v247
    %v542 = vunpack.c.l.b16 %v248
    %v543 = vunpack.c.h.b16 %v248
    %v544 = vunpack.c.l.b16 %v249
    %v545 = vunpack.c.h.b16 %v249
    %v546 = vunpack.c.l.b16 %v250
    %v547 = vunpack.c.h.b16 %v250
    %v548 = vunpack.c.l.b16 %v251
    %v549 = vunpack.c.h.b16 %v251
    %v550 = vunpack.c.l.b16 %v252
    %v551 = vunpack.c.h.b16 %v252
    %v552 = vunpack.c.l.b16 %v253
    %v553 = vunpack.c.h.b16 %v253
    %v554 = vunpack.c.l.b16 %v254
    %v555 = vunpack.c.h.b16 %v254
    %v556 = vunpack.c.l.b16 %v255
    %v557 = vunpack.c.h.b16 %v255
    %v558 = vunpack.c.l.b16 %v256
    %v559 = vunpack.c.h.b16 %v256
    %v560 = vunpack.c.l.b16 %v257
    %v561 = vunpack.c.h.b16 %v257
    %v562 = vunpack.c.l.b16 %v258
    %v563 = vunpack.c.h.b16 %v258
    %v564 = vunpack.c.l.b16 %v259
    %v565 = vunpack.c.h.b16 %v259
    %v566 = vunpack.c.l.b16 %v260
    %v567 = vunpack.c.h.b16 %v260
    %v568 = vunpack.c.l.b16 %v261
    %v569 = vunpack.c.h.b16 %v261
    %v570 = vunpack.c.l.b16 %v262
    %v571 = vunpack.c.h.b16 %v262
    %v572 = vunpack.c.l.b16 %v263
    %v573 = vunpack.c.h.b16 %v263
    %v574 = vunpack.c.l.b16 %v264
    %v575 = vunpack.c.h.b16 %v264
    %v576 = vunpack.c.l.b16 %v265
    %v577 = vunpack.c.h.b16 %v265
    %v578 = vunpack.c.l.b16 %v266
    %v579 = vunpack.c.h.b16 %v266
    %v580 = vunpack.c.l.b16 %v267
    %v581 = vunpack.c.h.b16 %v267
    %v582 = vunpack.c.l.b16 %v268
    %v583 = vunpack.c.h.b16 %v268
    %v584 = vunpack.c.l.b16 %v269
    %v585 = vunpack.c.h.b16 %v269
    %v586 = vunpack.c.l.b16 %v270
    %v587 = vunpack.c.h.b16 %v270
    %v588 = vunpack.c.l.b16 %v271
    %v589 = vunpack.c.h.b16 %v271
    %v590 = vunpack.c.l.b16 %v272
    %v591 = vunpack.c.h.b16 %v272
    %v592 = vunpack.c.l.b16 %v273
    %v593 = vunpack.c.h.b16 %v273
    %v594 = vunpack.c.l.b16 %v274
    %v595 = vunpack.c.h.b16 %v274
    %v596 = vunpack.c.l.b16 %v275
    %v597 = vunpack.c.h.b16 %v275
    %v598 = vunpack.c.l.b16 %v276
    %v599 = vunpack.c.h.b16 %v276
    %v600 = vunpack.c.l.b16 %v277
    %v601 = vunpack.c.h.b16 %v277
    %v602 = vunpack.c.l.b16 %v278
    %v603 = vunpack.c.h.b16 %v278
    %v604 = vunpack.c.l.b16 %v279
    %v605 = vunpack.c.h.b16 %v279
    %v606 = vunpack.c.l.b16 %v280
    %v607 = vunpack.c.h.b16 %v280
    %v608 = vunpack.c.l.b16 %v281
    %v609 = vunpack.c.h.b16 %v281
    %v610 = vunpack.c.l.b16 %v282
    %v611 = vunpack.c.h.b16 %v282
    %v612 = vunpack.c.l.b16 %v283
    %v613 = vunpack.c.h.b16 %v283
    %v614 = vunpack.c.l.b16 %v284
    %v615 = vunpack.c.h.b16 %v284
    %v616 = vunpack.c.l.b16 %v285
    %v617 = vunpack.c.h.b16 %v285
    %v618 = vunpack.c.l.b16 %v286
    %v619 = vunpack.c.h.b16 %v286
    %v620 = vunpack.c.l.b16 %v287
    %v621 = vunpack.c.h.b16 %v287
    %v622 = vunpack.c.l.b16 %v288
    %v623 = vunpack.c.h.b16 %v288
    %v624 = vunpack.c.l.b16 %v289
    %v625 = vunpack.c.h.b16 %v289
    %v626 = vunpack.c.l.b16 %v290
    %v627 = vunpack.c.h.b16 %v290
    %v628 = vunpack.c.l.b16 %v291
    %v629 = vunpack.c.h.b16 %v291
    %v630 = vunpack.c.l.b16 %v292
    %v631 = vunpack.c.h.b16 %v292
    %v632 = vunpack.c.l.b16 %v293
    %v633 = vunpack.c.h.b16 %v293
    %v634 = vunpack.c.l.b16 %v294
    %v635 = vunpack.c.h.b16 %v294
    %v636 = vunpack.c.l.b16 %v295
    %v637 = vunpack.c.h.b16 %v295
    %v638 = vunpack.c.l.b16 %v296
    %v639 = vunpack.c.h.b16 %v296
    %v640 = vunpack.c.l.b16 %v297
    %v641 = vunpack.c.h.b16 %v297
    %v642 = vunpack.c.l.b16 %v298
    %v643 = vunpack.c.h.b16 %v298
    %v644 = vunpack.c.l.b16 %v299
    %v645 = vunpack.c.h.b16 %v299
    %v646 = vunpack.c.l.b16 %v300
    %v647 = vunpack.c.h.b16 %v300
    %v648 = vunpack.c.l.b16 %v301
    %v649 = vunpack.c.h.b16 %v301
    %v650 = vunpack.c.l.b16 %v302
    %v651 = vunpack.c.h.b16 %v302
    %v652 = vunpack.c.l.b16 %v303
    %v653 = vunpack.c.h.b16 %v303
    %v654 = vunpack.c.l.b16 %v304
    %v655 = vunpack.c.h.b16 %v304
    %v656 = vunpack.c.l.b16 %v305
    %v657 = vunpack.c.h.b16 %v305
    %v658 = vunpack.c.l.b16 %v306
    %v659 = vunpack.c.h.b16 %v306
    %v660 = vunpack.c.l.b16 %v307
    %v661 = vunpack.c.h.b16 %v307
    %v662 = vunpack.c.l.b16 %v308
    %v663 = vunpack.c.h.b16 %v308
    %v664 = vunpack.c.l.b16 %v309
    %v665 = vunpack.c.h.b16 %v309
    %v666 = vunpack.c.l.b16 %v310
    %v667 = vunpack.c.h.b16 %v310
    %v668 = vunpack.c.l.b16 %v311
    %v669 = vunpack.c.h.b16 %v311
    %v670 = vunpack.c.l.b16 %v312
    %v671 = vunpack.c.h.b16 %v312
    %v672 = vunpack.c.l.b16 %v313
    %v673 = vunpack.c.h.b16 %v313
    %v674 = vunpack.c.l.b16 %v314
    %v675 = vunpack.c.h.b16 %v314
    %v676 = vunpack.c.l.b16 %v315
    %v677 = vunpack.c.h.b16 %v315
    %v678 = vunpack.c.l.b16 %v316
    %v679 = vunpack.c.h.b16 %v316
    %v680 = vunpack.c.l.b16 %v317
    %v681 = vunpack.c.h.b16 %v317
    %v682 = vunpack.c.l.b16 %v318
    %v683 = vunpack.c.h.b16 %v318
    %v684 = vunpack.c.l.b16 %v319
    %v685 = vunpack.c.h.b16 %v319
    %v686 = vunpack.c.l.b16 %v320
    %v687 = vunpack.c.h.b16 %v320
    %v688 = vunpack.c.l.b16 %v321
    %v689 = vunpack.c.h.b16 %v321
    %v690 = vunpack.c.l.b16 %v322
    %v691 = vunpack.c.h.b16 %v322
    %v692 = vunpack.c.l.b16 %v323
    %v693 = vunpack.c.h.b16 %v323
    %v694 = vunpack.c.l.b16 %v324
    %v695 = vunpack.c.h.b16 %v324
    %v696 = vunpack.c.l.b16 %v325
    %v697 = vunpack.c.h.b16 %v325
    %v698 = vunpack.c.l.b16 %v326
    %v699 = vunpack.c.h.b16 %v326
    %v700 = vunpack.c.l.b16 %v327
    %v701 = vunpack.c.h.b16 %v327
    %v702 = vunpack.c.l.b16 %v328
    %v703 = vunpack.c.h.b16 %v328
    %v704 = vunpack.c.l.b16 %v329
    %v705 = vunpack.c.h.b16 %v329
    %v706 = vunpack.c.l.b16 %v330
    %v707 = vunpack.c.h.b16 %v330
    %v708 = vunpack.c.l.b16 %v331
    %v709 = vunpack.c.h.b16 %v331
    %v710 = vunpack.c.l.b16 %v332
    %v711 = vunpack.c.h.b16 %v332
    %v712 = vunpack.c.l.b16 %v333
    %v713 = vunpack.c.h.b16 %v333
    %v714 = vunpack.c.l.b16 %v334
    %v715 = vunpack.c.h.b16 %v334
    %v716 = vunpack.c.l.b16 %v335
    %v717 = vunpack.c.h.b16 %v335
    %v718 = vunpack.c.l.b16 %v336
    %v719 = vunpack.c.h.b16 %v336
    %v720 = vunpack.c.l.b16 %v337
    %v721 = vunpack.c.h.b16 %v337
    %v722 = vunpack.c.l.b16 %v338
    %v723 = vunpack.c.h.b16 %v338
    %v724 = vunpack.c.l.b16 %v339
    %v725 = vunpack.c.h.b16 %v339
    %v726 = vunpack.c.l.b16 %v340
    %v727 = vunpack.c.h.b16 %v340
    %v728 = vunpack.c.l.b16 %v341
    %v729 = vunpack.c.h.b16 %v341
    %v730 = vunpack.c.l.b16 %v342
    %v731 = vunpack.c.h.b16 %v342
    %v732 = vunpack.c.l.b16 %v343
    %v733 = vunpack.c.h.b16 %v343
    %v734 = vunpack.c.l.b16 %v344
    %v735 = vunpack.c.h.b16 %v344
    %v736 = vunpack.c.l.b16 %v345
    %v737 = vunpack.c.h.b16 %v345
    %v738 = vunpack.c.l.b16 %v346
    %v739 = vunpack.c.h.b16 %v346
    %v740 = vunpack.c.l.b16 %v347
    %v741 = vunpack.c.h.b16 %v347
    %v742 = vunpack.c.l.b16 %v348
    %v743 = vunpack.c.h.b16 %v348
    %v744 = vunpack.c.l.b16 %v349
    %v745 = vunpack.c.h.b16 %v349
    %v746 = vunpack.c.l.b16 %v350
    %v747 = vunpack.c.h.b16 %v350
    %v748 = vunpack.c.l.b16 %v351
    %v749 = vunpack.c.h.b16 %v351
    %v750 = vunpack.c.l.b16 %v352
    %v751 = vunpack.c.h.b16 %v352
    %v752 = vunpack.c.l.b16 %v353
    %v753 = vunpack.c.h.b16 %v353
    %v754 = vunpack.c.l.b16 %v354
    %v755 = vunpack.c.h.b16 %v354
    %v756 = vunpack.c.l.b16 %v355
    %v757 = vunpack.c.h.b16 %v355
    %v758 = vunpack.c.l.b16 %v356
    %v759 = vunpack.c.h.b16 %v356
    %v760 = vunpack.c.l.b16 %v357
    %v761 = vunpack.c.h.b16 %v357
    %v762 = vunpack.c.l.b16 %v358
    %v763 = vunpack.c.h.b16 %v358
    %v764 = vunpack.c.l.b16 %v359
    %v765 = vunpack.c.h.b16 %v359
    %v766 = vpack.c.b16 %v514, %v510
    %v767 = vpack.c.b16 %v515, %v511
    %v768 = vpack.c.b16 %v516, %v512
    %v769 = vpack.c.b16 %v517, %v513
    %v770 = vpack.c.b16 %v522, %v518
    %v771 = vpack.c.b16 %v523, %v519
    %v772 = vpack.c.b16 %v524, %v520
    %v773 = vpack.c.b16 %v525, %v521
    %v774 = vpack.c.b16 %v530, %v526
    %v775 = vpack.c.b16 %v531, %v527
    %v776 = vpack.c.b16 %v532, %v528
    %v777 = vpack.c.b16 %v533, %v529
    %v778 = vpack.c.b16 %v538, %v534
    %v779 = vpack.c.b16 %v539, %v535
    %v780 = vpack.c.b16 %v540, %v536
    %v781 = vpack.c.b16 %v541, %v537
    %v782 = vpack.c.b16 %v546, %v542
    %v783 = vpack.c.b16 %v547, %v543
    %v784 = vpack.c.b16 %v548, %v544
    %v785 = vpack.c.b16 %v549, %v545
    %v786 = vpack.c.b16 %v554, %v550
    %v787 = vpack.c.b16 %v555, %v551
    %v788 = vpack.c.b16 %v556, %v552
    %v789 = vpack.c.b16 %v557, %v553
    %v790 = vpack.c.b16 %v562, %v558
    %v791 = vpack.c.b16 %v563, %v559
    %v792 = vpack.c.b16 %v564, %v560
    %v793 = vpack.c.b16 %v565, %v561
    %v794 = vpack.c.b16 %v570, %v566
    %v795 = vpack.c.b16 %v571, %v567
    %v796 = vpack.c.b16 %v572, %v568
    %v797 = vpack.c.b16 %v573, %v569
    %v798 = vpack.c.b16 %v578, %v574
    %v799 = vpack.c.b16 %v579, %v575
    %v800 = vpack.c.b16 %v580, %v576
    %v801 = vpack.c.b16 %v581, %v577
    %v802 = vpack.c.b16 %v586, %v582
    %v803 = vpack.c.b16 %v587, %v583
    %v804 = vpack.c.b16 %v588, %v584
    %v805 = vpack.c.b16 %v589, %v585
    %v806 = vpack.c.b16 %v594, %v590
    %v807 = vpack.c.b16 %v595, %v591
    %v808 = vpack.c.b16 %v596, %v592
    %v809 = vpack.c.b16 %v597, %v593
    %v810 = vpack.c.b16 %v602, %v598
    %v811 = vpack.c.b16 %v603, %v599
    %v812 = vpack.c.b16 %v604, %v600
    %v813 = vpack.c.b16 %v605, %v601
    %v814 = vpack.c.b16 %v610, %v606
    %v815 = vpack.c.b16 %v611, %v607
    %v816 = vpack.c.b16 %v612, %v608
    %v817 = vpack.c.b16 %v613, %v609
    %v818 = vpack.c.b16 %v618, %v614
    %v819 = vpack.c.b16 %v619, %v615
    %v820 = vpack.c.b16 %v620, %v616
    %v821 = vpack.c.b16 %v621, %v617
    %v822 = vpack.c.b16 %v626, %v622
    %v823 = vpack.c.b16 %v627, %v623
    %v824 = vpack.c.b16 %v628, %v624
    %v825 = vpack.c.b16 %v629, %v625
    %v826 = vpack.c.b16 %v634, %v630
    %v827 = vpack.c.b16 %v635, %v631
    %v828 = vpack.c.b16 %v636, %v632
    %v829 = vpack.c.b16 %v637, %v633
    %v830 = vpack.c.b16 %v642, %v638
    %v831 = vpack.c.b16 %v643, %v639
    %v832 = vpack.c.b16 %v644, %v640
    %v833 = vpack.c.b16 %v645, %v641
    %v834 = vpack.c.b16 %v650, %v646
    %v835 = vpack.c.b16 %v651, %v647
    %v836 = vpack.c.b16 %v652, %v648
    %v837 = vpack.c.b16 %v653, %v649
    %v838 = vpack.c.b16 %v658, %v654
    %v839 = vpack.c.b16 %v659, %v655
    %v840 = vpack.c.b16 %v660, %v656
    %v841 = vpack.c.b16 %v661, %v657
    %v842 = vpack.c.b16 %v666, %v662
    %v843 = vpack.c.b16 %v667, %v663
    %v844 = vpack.c.b16 %v668, %v664
    %v845 = vpack.c.b16 %v669, %v665
    %v846 = vpack.c.b16 %v674, %v670
    %v847 = vpack.c.b16 %v675, %v671
    %v848 = vpack.c.b16 %v676, %v672
    %v849 = vpack.c.b16 %v677, %v673
    %v850 = vpack.c.b16 %v682, %v678
    %v851 = vpack.c.b16 %v683, %v679
    %v852 = vpack.c.b16 %v684, %v680
    %v853 = vpack.c.b16 %v685, %v681
    %v854 = vpack.c.b16 %v690, %v686
    %v855 = vpack.c.b16 %v691, %v687
    %v856 = vpack.c.b16 %v692, %v688
    %v857 = vpack.c.b16 %v693, %v689
    %v858 = vpack.c.b16 %v698, %v694
    %v859 = vpack.c.b16 %v699, %v695
    %v860 = vpack.c.b16 %v700, %v696
    %v861 = vpack.c.b16 %v701, %v697
    %v862 = vpack.c.b16 %v706, %v702
    %v863 = vpack.c.b16 %v707, %v703
    %v864 = vpack.c.b16 %v708, %v704
    %v865 = vpack.c.b16 %v709, %v705
    %v866 = vpack.c.b16 %v714, %v710
    %v867 = vpack.c.b16 %v715, %v711
    %v868 = vpack.c.b16 %v716, %v712
    %v869 = vpack.c.b16 %v717, %v713
    %v870 = vpack.c.b16 %v722, %v718
    %v871 = vpack.c.b16 %v723, %v719
    %v872 = vpack.c.b16 %v724, %v720
    %v873 = vpack.c.b16 %v725, %v721
    %v874 = vpack.c.b16 %v730, %v726
    %v875 = vpack.c.b16 %v731, %v727
    %v876 = vpack.c.b16 %v732, %v728
    %v877 = vpack.c.b16 %v733, %v729
    %v878 = vpack.c.b16 %v738, %v734
    %v879 = vpack.c.b16 %v739, %v735
    %v880 = vpack.c.b16 %v740, %v736
    %v881 = vpack.c.b16 %v741, %v737
    %v882 = vpack.c.b16 %v746, %v742
    %v883 = vpack.c.b16 %v747, %v743
    %v884 = vpack.c.b16 %v748, %v744
    %v885 = vpack.c.b16 %v749, %v745
    %v886 = vpack.c.b16 %v754, %v750
    %v887 = vpack.c.b16 %v755, %v751
    %v888 = vpack.c.b16 %v756, %v752
    %v889 = vpack.c.b16 %v757, %v753
    %v890 = vpack.c.b16 %v762, %v758
    %v891 = vpack.c.b16 %v763, %v759
    %v892 = vpack.c.b16 %v764, %v760
    %v893 = vpack.c.b16 %v765, %v761
    %1022 = vmatprep.subr.bf16.mxu0 %v767
    %1023 = vmatpush1.bf16.msra.mxu0 %v766
    %1024 = vmatprep.subr.bf16.mxu0 %v771
    %1025 = vmatpush1.bf16.msra.mxu0 %v770
    %1026 = vmatprep.subr.bf16.mxu0 %v775
    %1027 = vmatpush1.bf16.msra.mxu0 %v774
    %1028 = vmatprep.subr.bf16.mxu0 %v779
    %1029 = vmatpush1.bf16.msra.mxu0 %v778
    %1030 = vmatprep.subr.bf16.mxu0 %v783
    %1031 = vmatpush1.bf16.msra.mxu0 %v782
    %1032 = vmatprep.subr.bf16.mxu0 %v787
    %1033 = vmatpush1.bf16.msra.mxu0 %v786
    %1034 = vmatprep.subr.bf16.mxu0 %v791
    %1035 = vmatpush1.bf16.msra.mxu0 %v790
    %1036 = vmatprep.subr.bf16.mxu0 %v795
    %1037 = vmatpush1.bf16.msra.mxu0 %v794
    %1038 = vmatprep.subr.bf16.mxu0 %v799
    %1039 = vmatpush1.bf16.msra.mxu0 %v798
    %1040 = vmatprep.subr.bf16.mxu0 %v803
    %1041 = vmatpush1.bf16.msra.mxu0 %v802
    %1042 = vmatprep.subr.bf16.mxu0 %v807
    %1043 = vmatpush1.bf16.msra.mxu0 %v806
    %1044 = vmatprep.subr.bf16.mxu0 %v811
    %1045 = vmatpush1.bf16.msra.mxu0 %v810
    %1046 = vmatprep.subr.bf16.mxu0 %v815
    %1047 = vmatpush1.bf16.msra.mxu0 %v814
    %1048 = vmatprep.subr.bf16.mxu0 %v819
    %1049 = vmatpush1.bf16.msra.mxu0 %v818
    %1050 = vmatprep.subr.bf16.mxu0 %v823
    %1051 = vmatpush1.bf16.msra.mxu0 %v822
    %1052 = vmatprep.subr.bf16.mxu0 %v827
    %1053 = vmatpush1.bf16.msra.mxu0 %v826
    %1054 = vmatprep.mubr.bf16.mxu0 %v229
    %1055 = vmatmul.mubr.bf16.gmra.mrb[0].mxu0 %v228
    %v1056 = vpop.f32.mrb[0].mxu0
    %v1057 = vadd.f32 %v365, %v1056
    %v1058 = vpop.f32.mrb[0].mxu0
    %v1059 = vadd.f32 %v369, %v1058
    %v1060 = vpop.f32.mrb[0].mxu0
    %v1061 = vpop.f32.mrb[0].mxu0
    %1062 = vdwg.mxu0
    %1063 = vmatprep.subr.bf16.mxu0 %v831
    %1064 = vmatpush1.bf16.msra.mxu0 %v830
    %1065 = vmatprep.subr.bf16.mxu0 %v835
    %1066 = vmatpush1.bf16.msra.mxu0 %v834
    %1067 = vmatprep.subr.bf16.mxu0 %v839
    %1068 = vmatpush1.bf16.msra.mxu0 %v838
    %1069 = vmatprep.subr.bf16.mxu0 %v843
    %1070 = vmatpush1.bf16.msra.mxu0 %v842
    %1071 = vmatprep.subr.bf16.mxu0 %v847
    %1072 = vmatpush1.bf16.msra.mxu0 %v846
    %1073 = vmatprep.subr.bf16.mxu0 %v851
    %1074 = vmatpush1.bf16.msra.mxu0 %v850
    %1075 = vmatprep.subr.bf16.mxu0 %v855
    %1076 = vmatpush1.bf16.msra.mxu0 %v854
    %1077 = vmatprep.subr.bf16.mxu0 %v859
    %1078 = vmatpush1.bf16.msra.mxu0 %v858
    %1079 = vmatprep.subr.bf16.mxu0 %v863
    %1080 = vmatpush1.bf16.msra.mxu0 %v862
    %1081 = vmatprep.subr.bf16.mxu0 %v867
    %1082 = vmatpush1.bf16.msra.mxu0 %v866
    %1083 = vmatprep.subr.bf16.mxu0 %v871
    %1084 = vmatpush1.bf16.msra.mxu0 %v870
    %1085 = vmatprep.subr.bf16.mxu0 %v875
    %1086 = vmatpush1.bf16.msra.mxu0 %v874
    %1087 = vmatprep.subr.bf16.mxu0 %v879
    %1088 = vmatpush1.bf16.msra.mxu0 %v878
    %1089 = vmatprep.subr.bf16.mxu0 %v883
    %1090 = vmatpush1.bf16.msra.mxu0 %v882
    %1091 = vmatprep.subr.bf16.mxu0 %v887
    %1092 = vmatpush1.bf16.msra.mxu0 %v886
    %1093 = vmatprep.subr.bf16.mxu0 %v891
    %1094 = vmatpush1.bf16.msra.mxu0 %v890
    %1095 = vmatprep.mubr.bf16.mxu0 %v231
    %1096 = vmatmul.mubr.bf16.gmra.mrb[0].mxu0 %v230
    %v1097 = vpop.f32.mrb[0].mxu0
    %v1098 = vadd.f32 %v1057, %v1097
    %v1099 = vpop.f32.mrb[0].mxu0
    %v1100 = vadd.f32 %v1059, %v1099
    %v1101 = vpop.f32.mrb[0].mxu0
    %v1102 = vpop.f32.mrb[0].mxu0
    %1103 = vdwg.mxu0
    %1104 = vmatprep.subr.bf16.mxu0 %v769
    %1105 = vmatpush1.bf16.msra.mxu0 %v768
    %1106 = vmatprep.subr.bf16.mxu0 %v773
    %1107 = vmatpush1.bf16.msra.mxu0 %v772
    %1108 = vmatprep.subr.bf16.mxu0 %v777
    %1109 = vmatpush1.bf16.msra.mxu0 %v776
    %1110 = vmatprep.subr.bf16.mxu0 %v781
    %1111 = vmatpush1.bf16.msra.mxu0 %v780
    %1112 = vmatprep.subr.bf16.mxu0 %v785
    %1113 = vmatpush1.bf16.msra.mxu0 %v784
    %1114 = vmatprep.subr.bf16.mxu0 %v789
    %1115 = vmatpush1.bf16.msra.mxu0 %v788
    %1116 = vmatprep.subr.bf16.mxu0 %v793
    %1117 = vmatpush1.bf16.msra.mxu0 %v792
    %1118 = vmatprep.subr.bf16.mxu0 %v797
    %1119 = vmatpush1.bf16.msra.mxu0 %v796
    %1120 = vmatprep.subr.bf16.mxu0 %v801
    %1121 = vmatpush1.bf16.msra.mxu0 %v800
    %1122 = vmatprep.subr.bf16.mxu0 %v805
    %1123 = vmatpush1.bf16.msra.mxu0 %v804
    %1124 = vmatprep.subr.bf16.mxu0 %v809
    %1125 = vmatpush1.bf16.msra.mxu0 %v808
    %1126 = vmatprep.subr.bf16.mxu0 %v813
    %1127 = vmatpush1.bf16.msra.mxu0 %v812
    %1128 = vmatprep.subr.bf16.mxu0 %v817
    %1129 = vmatpush1.bf16.msra.mxu0 %v816
    %1130 = vmatprep.subr.bf16.mxu0 %v821
    %1131 = vmatpush1.bf16.msra.mxu0 %v820
    %1132 = vmatprep.subr.bf16.mxu0 %v825
    %1133 = vmatpush1.bf16.msra.mxu0 %v824
    %1134 = vmatprep.subr.bf16.mxu0 %v829
    %1135 = vmatpush1.bf16.msra.mxu0 %v828
    %1136 = vmatprep.mubr.bf16.mxu0 %v229
    %1137 = vmatmul.mubr.bf16.gmra.mrb[0].mxu0 %v228
    %v1138 = vpop.f32.mrb[0].mxu0
    %v1139 = vadd.f32 %v373, %v1138
    %v1140 = vpop.f32.mrb[0].mxu0
    %v1141 = vadd.f32 %v377, %v1140
    %v1142 = vpop.f32.mrb[0].mxu0
    %v1143 = vpop.f32.mrb[0].mxu0
    %1144 = vdwg.mxu0
    %1145 = vmatprep.subr.bf16.mxu0 %v833
    %1146 = vmatpush1.bf16.msra.mxu0 %v832
    %1147 = vmatprep.subr.bf16.mxu0 %v837
    %1148 = vmatpush1.bf16.msra.mxu0 %v836
    %1149 = vmatprep.subr.bf16.mxu0 %v841
    %1150 = vmatpush1.bf16.msra.mxu0 %v840
    %1151 = vmatprep.subr.bf16.mxu0 %v845
    %1152 = vmatpush1.bf16.msra.mxu0 %v844
    %1153 = vmatprep.subr.bf16.mxu0 %v849
    %1154 = vmatpush1.bf16.msra.mxu0 %v848
    %1155 = vmatprep.subr.bf16.mxu0 %v853
    %1156 = vmatpush1.bf16.msra.mxu0 %v852
    %1157 = vmatprep.subr.bf16.mxu0 %v857
    %1158 = vmatpush1.bf16.msra.mxu0 %v856
    %1159 = vmatprep.subr.bf16.mxu0 %v861
    %1160 = vmatpush1.bf16.msra.mxu0 %v860
    %1161 = vmatprep.subr.bf16.mxu0 %v865
    %1162 = vmatpush1.bf16.msra.mxu0 %v864
    %1163 = vmatprep.subr.bf16.mxu0 %v869
    %1164 = vmatpush1.bf16.msra.mxu0 %v868
    %1165 = vmatprep.subr.bf16.mxu0 %v873
    %1166 = vmatpush1.bf16.msra.mxu0 %v872
    %1167 = vmatprep.subr.bf16.mxu0 %v877
    %1168 = vmatpush1.bf16.msra.mxu0 %v876
    %1169 = vmatprep.subr.bf16.mxu0 %v881
    %1170 = vmatpush1.bf16.msra.mxu0 %v880
    %1171 = vmatprep.subr.bf16.mxu0 %v885
    %1172 = vmatpush1.bf16.msra.mxu0 %v884
    %1173 = vmatprep.subr.bf16.mxu0 %v889
    %1174 = vmatpush1.bf16.msra.mxu0 %v888
    %1175 = vmatprep.subr.bf16.mxu0 %v893
    %1176 = vmatpush1.bf16.msra.mxu0 %v892
    %1177 = vmatprep.mubr.bf16.mxu0 %v231
    %1178 = vmatmul.mubr.bf16.gmra.mrb[0].mxu0 %v230
    %v1179 = vpop.f32.mrb[0].mxu0
    %v1180 = vadd.f32 %v1139, %v1179
    %v1181 = vpop.f32.mrb[0].mxu0
    %v1182 = vadd.f32 %v1141, %v1181
    %v1183 = vpop.f32.mrb[0].mxu0
    %v1184 = vpop.f32.mrb[0].mxu0
    %1185 = vdwg.mxu0
    %v1186 = vmax.f32 %v1098, 0.0
    %v1187 = vmax.f32 %v1100, 0.0
    %v1188 = vmax.f32 %v1180, 0.0
    %v1189 = vmax.f32 %v1182, 0.0
    %v1190 = vld [vmem:[%s5] sm:$0xf]
    %v1192 = vlaneseq
    %v1193 = vshrl.u32 %v1192, 7
    %v1194 = vsub.s32 0, %v1193
    %v1195 = vrot.slane %v1190, %v1194
    %v1196 = vlaneseq
    %v1197 = vshrl.u32 %v1196, 7
    %v1198 = vsub.s32 1, %v1197
    %v1199 = vrot.slane %v1190, %v1198
    %v1200 = vlaneseq
    %v1201 = vshrl.u32 %v1200, 7
    %v1202 = vsub.s32 2, %v1201
    %v1203 = vrot.slane %v1190, %v1202
    %v1204 = vlaneseq
    %v1205 = vshrl.u32 %v1204, 7
    %v1206 = vsub.s32 3, %v1205
    %v1207 = vrot.slane %v1190, %v1206
    %v1212 = vmul.f32 %v1186, %v1195
    %v1213 = vmul.f32 %v1187, %v1199
    %v1214 = vmul.f32 %v1188, %v1203
    %v1215 = vmul.f32 %v1189, %v1207
    %v1216 = vadd.f32 %v1212, %v1213
    %v1217 = vadd.f32 %v1216, %v1214
    %v1218 = vadd.f32 %v1217, %v1215
    %1219 = vadd.xlane.f32.xlu0 %v1218
    %v1220 = vpop.xlane.xlu0 %1219
    %s1221 = sld [smem:[#allocation2]]
    %v1222 = vstv %s1221
    %v1223 = vadd.f32 %v1220, %v1222
    %v1224 = vsub.f32 0.0, %v1223
    %v1225 = vmul.f32 %v1224, 1.442695
    %v1226 = vpow.pop %v1225
    %v1227 = vadd.f32 %v1226, 1.0
    %v1228 = vrcp.pop %v1227
    %vm1229 = vcmask 7168
    %1230 = vst.msk [vmem:[%s7] sm:$0xff] %vm1229, %v1228
    // Predicated region
    $region42: #{tpu_custom_call.1} parent=1 // pred_check
      _
    $region43: #{tpu_custom_call.1} parent=1 // pred_check_branch
      %1232 = sbr.rel (0) target = $region45
    $region44: #{tpu_custom_call.1} parent=1 // pred_region
      _
    $region45: #{tpu_custom_call.1} parent=1 // pred_fallthru
      _
    // Predicated region
    $region46: #{tpu_custom_call.1} parent=1 // pred_check
      _
    $region47: #{tpu_custom_call.1} parent=1 // pred_check_branch
      %1234 = sbr.rel (0) target = $region49
    $region48: #{tpu_custom_call.1} parent=1 // pred_region
      _
    $region49: #{tpu_custom_call.1} parent=1 // pred_fallthru
      _
    %1235 = vsyncpa [#allocation4], 1
    %1236 = vsyncpa [#allocation6], 1

</llo_original>
